<compile_context>
chip_gen: v6e
topology: v6e:2x2x1
jax: 0.10.0
libtpu: 0.0.40
codegen_flags: <defaults>
</compile_context>

<pallas_src>
import functools

import numpy as np
import jax
import jax.numpy as jnp
from jax.experimental import pallas as pl
from jax.experimental.pallas import tpu as pltpu


# ------------------------------ Pallas kernel -------------------------------

def _listwise_ce_kernel(mmax_ref, pos_ref, neg_ref, u_old_ref,
                        u_new_ref, loss_ref, *,
                        gamma, eps, block_b, num_valid, mask_rows):
    """Fused per-batch-tile ListwiseCE forward.

    margin[b,p,j]     = neg[b,j] - pos[b,p]
    exp_margin        = exp(margin - m_max)            (m_max = global max)
    u_new[b,p]        = (1-gamma)*u_old + gamma*mean_j exp_margin
    loss contribution = sum_j margin*exp_margin / (u_new + eps)
    """
    m_max = mmax_ref[0]                                   # SMEM scalar -> sreg
    pos = pos_ref[...].astype(jnp.float32)                # (TB, P)   lane-aligned
    neg = neg_ref[...].astype(jnp.float32)                # (TB, NEG) lane-aligned
    u_old = u_old_ref[...]                                # (TB, P)   f32
    inv_num_neg = 1.0 / float(neg.shape[-1])

    # Overflow-safe factorization of exp(neg_j - pos_p - m_max):
    #   exp(neg_j - rmax) * exp(rmax - m_max - pos_p), both factors <= 1.
    # Avoids any (TB, P, NEG) 3-D intermediate.
    rmax = jnp.max(neg, axis=-1, keepdims=True)           # (TB, 1)   XLU
    e_neg = jnp.exp(neg - rmax)                           # (TB, NEG) EUP
    f_pos = jnp.exp((rmax - m_max) - pos)                 # (TB, P)   EUP

    s0 = jnp.sum(e_neg, axis=-1, keepdims=True)                  # sum_j e        (TB,1)
    s1 = jnp.sum((neg - rmax) * e_neg, axis=-1, keepdims=True)   # sum_j (neg-rmax)*e

    mean_e = f_pos * (s0 * inv_num_neg)                   # mean_j exp_margin (TB,P)
    u_new = (1.0 - gamma) * u_old + gamma * mean_e        # (TB, P)
    u_new_ref[...] = u_new

    # sum_j margin*exp_margin = f_pos * (s1 + (rmax - pos)*s0)
    # Both terms stay O(1) -> no catastrophic cancellation (review concern).
    numer = f_pos * (s1 + (rmax - pos) * s0)
    # Exact divide: only P elems/row; approx reciprocal error is amplified when
    # u_new ~ eps (first steps), so keep it exact.
    contrib = numer / (u_new + eps)

    if mask_rows:  # static flag: batch was padded up to a tile multiple
        rows = pl.program_id(0) * block_b + jax.lax.broadcasted_iota(
            jnp.int32, contrib.shape, 0)
        contrib = jnp.where(rows < num_valid, contrib, 0.0)

    # lane-dense (1,128) partial-loss slab per tile; tiny final sum in wrapper.
    loss_ref[...] = jnp.full(loss_ref.shape, jnp.sum(contrib), jnp.float32)


# ------------------------------ tile planning --------------------------------

def _round_up(x, m):
    return ((x + m - 1) // m) * m


def _plan_tiles(B, L, P, pred_bytes, block_b=None, vmem_budget_bytes=24 << 20):
    """VMEM-budget-driven batch tile.

    Budget (24 MiB) fits the 32 MiB default scoped VMEM on every generation,
    including v7x's 64 MiB physical VMEM. Tile is a multiple of 8 rows (16 for
    sub-32-bit predictions to match sublane packing).
    """
    align = 16 if pred_bytes < 4 else 8
    if block_b is not None:
        tb = max(align, _round_up(block_b, align))
    else:
        # double-buffered bytes per row: pos+neg inputs, u_old input, u_new out
        per_row = 2 * L * pred_bytes + 4 * P * 4
        tb = max(align, (vmem_budget_bytes // max(per_row, 1)) // align * align)
        b_pad0 = _round_up(B, align)
        tb = min(tb, b_pad0)
        # Prefer >= 2 grid steps so dimension_semantics=("parallel",) can use
        # the 2nd TensorCore on v7x; the extra ~0.35us step is noise on v5e/v6e.
        if b_pad0 > align and tb >= b_pad0:
            tb = _round_up(-(-b_pad0 // 2), align)
    b_pad = _round_up(B, tb)
    return tb, b_pad


# ------------------------------ jitted step ----------------------------------

def _listwise_ce_step(u, predictions, ids, *, num_pos, gamma, eps, block_b):
    """One full forward step: gather u, m_max, fused kernel, scatter u."""
    B, L = predictions.shape
    P = num_pos
    NEG = L - P

    # Slice once in the wrapper -> two lane-aligned refs for the kernel.
    # Keep the input dtype (bf16 stays bf16 -> half the HBM bytes streamed).
    pos = predictions[:, :P]
    neg = predictions[:, P:]

    # Global max of the (B*P, NEG) margin matrix; separable per row, fused by
    # XLA with the slicing inside this single jitted program.
    m_max = jnp.max(jnp.max(neg.astype(jnp.float32), axis=1)
                    - jnp.min(pos.astype(jnp.float32), axis=1))
    m_max = m_max.reshape(1).astype(jnp.float32)

    ids_flat = ids.reshape(-1)
    u_old = u[ids_flat].reshape(B, P).astype(jnp.float32)

    TB, B_pad = _plan_tiles(B, L, P, predictions.dtype.itemsize, block_b)
    if B_pad != B:
        padn = B_pad - B
        # Pad with copies of row 0 (same value range -> no overflow) and zero u.
        pos = jnp.concatenate([pos, jnp.broadcast_to(pos[:1], (padn, P))], 0)
        neg = jnp.concatenate([neg, jnp.broadcast_to(neg[:1], (padn, NEG))], 0)
        u_old = jnp.concatenate([u_old, jnp.zeros((padn, P), jnp.float32)], 0)
    T = B_pad // TB

    kernel = functools.partial(_listwise_ce_kernel, gamma=float(gamma),
                               eps=float(eps), block_b=TB, num_valid=B,
                               mask_rows=(B_pad != B))
    u_new, loss_parts = pl.pallas_call(
        kernel,
        grid=(T,),
        in_specs=[pl.BlockSpec(memory_space=pltpu.MemorySpace.SMEM),   # m_max (1,)
                  pl.BlockSpec((TB, P), lambda i: (i, 0)),             # pos tile
                  pl.BlockSpec((TB, NEG), lambda i: (i, 0)),           # neg tile
                  pl.BlockSpec((TB, P), lambda i: (i, 0))],            # u_old tile
        out_specs=(pl.BlockSpec((TB, P), lambda i: (i, 0)),            # u_new tile
                   pl.BlockSpec((1, 128), lambda i: (i, 0))),          # partial loss
        out_shape=(jax.ShapeDtypeStruct((B_pad, P), jnp.float32),
                   jax.ShapeDtypeStruct((T, 128), jnp.float32)),
        compiler_params=pltpu.CompilerParams(
            dimension_semantics=("parallel",),      # megacore on v7x (T >= 2)
            vmem_limit_bytes=32 << 20),
    )(m_max, pos, neg, u_old)

    # TODO(synk): assumes unique user_item_ids within the batch; duplicates need
    # PyTorch's scatter-then-re-gather (last writer wins) before the divide.
    u = u.at[ids_flat].set(u_new[:B].reshape(-1))

    loss = jnp.sum(loss_parts[:, 0]) / B
    return loss, u


# ------------------------------- module port ---------------------------------

class ListwiseCELossPallas:
    """JAX/Pallas port of libauc.losses.ListwiseCELoss forward."""

    def __init__(self, N, num_pos, gamma, eps=1e-10, block_b=None):
        self.num_pos = num_pos
        self.gamma = gamma
        self.eps = eps
        self.u = jnp.zeros((N,), jnp.float32)   # persistent moving-average state
        # One jitted program per call: gather + m_max + kernel + scatter, with
        # `u` donated so the O(N) state update is in-place (no HBM copy).
        self._step = jax.jit(
            functools.partial(_listwise_ce_step, num_pos=num_pos,
                              gamma=float(gamma), eps=float(eps),
                              block_b=block_b),
            donate_argnums=(0,))

    def __call__(self, predictions, batch):
        ids = batch['user_item_id'][:, :self.num_pos].astype(jnp.int32)
        loss, self.u = self._step(self.u, predictions, ids)
        return loss


# --------------------------- pure-numpy reference ----------------------------

def reference_forward(predictions, user_item_id, u0, num_pos, gamma, eps):
    """Float64 mirror of the PyTorch forward. Returns (loss, updated_u)."""
    pred = np.asarray(predictions, np.float64)
    B, L = pred.shape
    P = num_pos
    neg = np.repeat(pred[:, P:], P, axis=0)                    # (B*P, NEG)
    pos = pred[:, :P].reshape(-1)[:, None]                     # (B*P, 1)
    margin = neg - pos
    exp_margin = np.exp(margin - margin.max())
    ids = np.asarray(user_item_id)[:, :P].reshape(-1)
    u = np.array(u0, np.float64)
    u[ids] = (1.0 - gamma) * u[ids] + gamma * exp_margin.mean(axis=1)
    softmax = exp_margin / (u[ids][:, None] + eps)
    loss = float((margin * softmax).sum() / B)
    return loss, u


# ----------------------------------- main -------------------------------------

if __name__ == "__main__":
    key = jax.random.PRNGKey(0)
    tol = lambda ref: 1e-2 * abs(ref) + 1e-3   # f32 kernel vs f64 reference

    # --- config 1: small shapes, single tile, two calls (donated state carry) ---
    B, P, NEG = 8, 4, 12
    L, N = P + NEG, 256
    k1, k2, k3 = jax.random.split(key, 3)
    preds1 = jax.random.normal(k1, (B, L), jnp.float32)
    preds2 = jax.random.normal(k2, (B, L), jnp.float32)
    user_item_id = jax.random.permutation(k3, N)[:B * L].reshape(B, L)  # unique ids
    batch = {'user_item_id': user_item_id}

    loss_fn = ListwiseCELossPallas(N=N, num_pos=P, gamma=0.1)
    loss_a = jax.block_until_ready(loss_fn(preds1, batch))
    loss_b = jax.block_until_ready(loss_fn(preds2, batch))

    ref_a, u_ref = reference_forward(np.asarray(preds1), np.asarray(user_item_id),
                                     np.zeros(N), P, 0.1, 1e-10)
    ref_b, u_ref = reference_forward(np.asarray(preds2), np.asarray(user_item_id),
                                     u_ref, P, 0.1, 1e-10)
    assert abs(float(loss_a) - ref_a) <= tol(ref_a), (float(loss_a), ref_a)
    assert abs(float(loss_b) - ref_b) <= tol(ref_b), (float(loss_b), ref_b)
    np.testing.assert_allclose(np.asarray(loss_fn.u), u_ref, rtol=1e-3, atol=1e-6)

    # --- config 2: explicit batch tile -> grid=(4,), "parallel" batch axis ---
    B2, P2, NEG2 = 32, 4, 12
    L2, N2 = P2 + NEG2, 1024
    k4, k5 = jax.random.split(k1)
    preds3 = jax.random.normal(k4, (B2, L2), jnp.float32)
    ids2 = jax.random.permutation(k5, N2)[:B2 * L2].reshape(B2, L2)
    loss_fn2 = ListwiseCELossPallas(N=N2, num_pos=P2, gamma=0.1, block_b=8)
    loss_c = jax.block_until_ready(loss_fn2(preds3, {'user_item_id': ids2}))
    ref_c, _ = reference_forward(np.asarray(preds3), np.asarray(ids2),
                                 np.zeros(N2), P2, 0.1, 1e-10)
    assert abs(float(loss_c) - ref_c) <= tol(ref_c), (float(loss_c), ref_c)

    # --- config 3: bf16 predictions + B not a multiple of the tile (padding/mask) ---
    B3, P3, NEG3 = 12, 4, 12
    L3, N3 = P3 + NEG3, 512
    k6, k7 = jax.random.split(k2)
    preds4 = jax.random.normal(k6, (B3, L3), jnp.float32).astype(jnp.bfloat16)
    ids3 = jax.random.permutation(k7, N3)[:B3 * L3].reshape(B3, L3)
    loss_fn3 = ListwiseCELossPallas(N=N3, num_pos=P3, gamma=0.1)
    loss_d = jax.block_until_ready(loss_fn3(preds4, {'user_item_id': ids3}))
    preds4_f64 = np.asarray(preds4.astype(jnp.float32), np.float64)  # same values
    ref_d, _ = reference_forward(preds4_f64, np.asarray(ids3),
                                 np.zeros(N3), P3, 0.1, 1e-10)
    assert abs(float(loss_d) - ref_d) <= tol(ref_d), (float(loss_d), ref_d)

    print("KERNEL_OK")
</pallas_src>

<mosaic_0001>
module attributes {stable_mosaic.version = 11 : i64} {
  func.func @_listwise_ce_kernel(%arg0: i32, %arg1: memref<1xf32, #tpu.memory_space<smem>>, %arg2: memref<8x4xf32, #tpu.memory_space<vmem>>, %arg3: memref<8x12xf32, #tpu.memory_space<vmem>>, %arg4: memref<8x4xf32, #tpu.memory_space<vmem>>, %arg5: memref<8x4xf32, #tpu.memory_space<vmem>>, %arg6: memref<1x128xf32, #tpu.memory_space<vmem>>) attributes {dimension_semantics = [#tpu.dimension_semantics<parallel>], iteration_bounds = array<i64: 1>, scalar_prefetch = 0 : i64, scratch_operands = 0 : i64, tpu.core_type = #tpu.core_type<tc>, window_params = [{transform_indices = @transform_0, window_bounds = array<i64: 1>}, {transform_indices = @transform_1, window_bounds = array<i64: 8, 4>}, {transform_indices = @transform_2, window_bounds = array<i64: 8, 12>}, {transform_indices = @transform_3, window_bounds = array<i64: 8, 4>}, {transform_indices = @transform_4, window_bounds = array<i64: 8, 4>}, {transform_indices = @transform_5, window_bounds = array<i64: 1, 128>}]} {
    %c0 = arith.constant 0 : index
    %0 = memref.load %arg1[%c0] : memref<1xf32, #tpu.memory_space<smem>>
    %c0_0 = arith.constant 0 : index
    %c0_1 = arith.constant 0 : index
    %1 = vector.load %arg2[%c0_0, %c0_1] : memref<8x4xf32, #tpu.memory_space<vmem>>, vector<8x4xf32>
    %c0_2 = arith.constant 0 : index
    %c0_3 = arith.constant 0 : index
    %2 = vector.load %arg3[%c0_2, %c0_3] : memref<8x12xf32, #tpu.memory_space<vmem>>, vector<8x12xf32>
    %c0_4 = arith.constant 0 : index
    %c0_5 = arith.constant 0 : index
    %3 = vector.load %arg4[%c0_4, %c0_5] : memref<8x4xf32, #tpu.memory_space<vmem>>, vector<8x4xf32>
    %cst = arith.constant dense<0xFF800000> : vector<8xf32>
    %4 = vector.multi_reduction <maximumf>, %2, %cst [1] : vector<8x12xf32> to vector<8xf32>
    %5 = vector.shape_cast %4 : vector<8xf32> to vector<8x1xf32>
    %6 = vector.broadcast %5 : vector<8x1xf32> to vector<8x12xf32>
    %7 = arith.subf %2, %6 : vector<8x12xf32>
    %8 = math.exp %7 : vector<8x12xf32>
    %9 = vector.broadcast %0 : f32 to vector<8x1xf32>
    %10 = arith.subf %5, %9 : vector<8x1xf32>
    %11 = vector.broadcast %10 : vector<8x1xf32> to vector<8x4xf32>
    %12 = arith.subf %11, %1 : vector<8x4xf32>
    %13 = math.exp %12 : vector<8x4xf32>
    %cst_6 = arith.constant dense<0.000000e+00> : vector<8xf32>
    %14 = vector.multi_reduction <add>, %8, %cst_6 [1] : vector<8x12xf32> to vector<8xf32>
    %15 = vector.shape_cast %14 : vector<8xf32> to vector<8x1xf32>
    %16 = vector.broadcast %5 : vector<8x1xf32> to vector<8x12xf32>
    %17 = arith.subf %2, %16 : vector<8x12xf32>
    %18 = arith.mulf %17, %8 : vector<8x12xf32>
    %cst_7 = arith.constant dense<0.000000e+00> : vector<8xf32>
    %19 = vector.multi_reduction <add>, %18, %cst_7 [1] : vector<8x12xf32> to vector<8xf32>
    %20 = vector.shape_cast %19 : vector<8xf32> to vector<8x1xf32>
    %cst_8 = arith.constant 0.0833333358 : f32
    %21 = vector.broadcast %cst_8 : f32 to vector<8x1xf32>
    %22 = arith.mulf %15, %21 : vector<8x1xf32>
    %23 = vector.broadcast %22 : vector<8x1xf32> to vector<8x4xf32>
    %24 = arith.mulf %13, %23 : vector<8x4xf32>
    %cst_9 = arith.constant 0.899999976 : f32
    %25 = vector.broadcast %cst_9 : f32 to vector<8x4xf32>
    %26 = arith.mulf %25, %3 : vector<8x4xf32>
    %cst_10 = arith.constant 1.000000e-01 : f32
    %27 = vector.broadcast %cst_10 : f32 to vector<8x4xf32>
    %28 = arith.mulf %27, %24 : vector<8x4xf32>
    %29 = arith.addf %26, %28 : vector<8x4xf32>
    %c0_11 = arith.constant 0 : index
    %c0_12 = arith.constant 0 : index
    %30 = vector.load %arg5[%c0_11, %c0_12] : memref<8x4xf32, #tpu.memory_space<vmem>>, vector<8x4xf32>
    tpu.vector_store %arg5[%c0_11, %c0_12], %29 {strides = array<i32>} : memref<8x4xf32, #tpu.memory_space<vmem>>, vector<8x4xf32>,
    %31 = vector.broadcast %5 : vector<8x1xf32> to vector<8x4xf32>
    %32 = arith.subf %31, %1 : vector<8x4xf32>
    %33 = vector.broadcast %15 : vector<8x1xf32> to vector<8x4xf32>
    %34 = arith.mulf %32, %33 : vector<8x4xf32>
    %35 = vector.broadcast %20 : vector<8x1xf32> to vector<8x4xf32>
    %36 = arith.addf %35, %34 : vector<8x4xf32>
    %37 = arith.mulf %13, %36 : vector<8x4xf32>
    %cst_13 = arith.constant 1.000000e-10 : f32
    %38 = vector.broadcast %cst_13 : f32 to vector<8x4xf32>
    %39 = arith.addf %29, %38 : vector<8x4xf32>
    %40 = arith.divf %37, %39 : vector<8x4xf32>
    %41 = vector.shape_cast %40 : vector<8x4xf32> to vector<1x8x4xf32>
    %cst_14 = arith.constant dense<0.000000e+00> : vector<1xf32>
    %42 = vector.multi_reduction <add>, %41, %cst_14 [1, 2] : vector<1x8x4xf32> to vector<1xf32>
    %43 = vector.shape_cast %42 : vector<1xf32> to vector<1x1x1xf32>
    %44 = vector.extract %43[0, 0, 0] : f32 from vector<1x1x1xf32>
    %45 = vector.broadcast %44 : f32 to vector<1x128xf32>
    %c0_15 = arith.constant 0 : index
    %c0_16 = arith.constant 0 : index
    %46 = vector.load %arg6[%c0_15, %c0_16] : memref<1x128xf32, #tpu.memory_space<vmem>>, vector<1x128xf32>
    tpu.vector_store %arg6[%c0_15, %c0_16], %45 {strides = array<i32>} : memref<1x128xf32, #tpu.memory_space<vmem>>, vector<1x128xf32>,
    return
  }
  func.func @transform_0(%arg0: i32) -> i32 {
    %c0_i32 = arith.constant 0 : i32
    %c0_i32_0 = arith.constant 0 : i32
    return %c0_i32 : i32
  }
  func.func @transform_1(%arg0: i32) -> (i32, i32) {
    %c0_i32 = arith.constant 0 : i32
    %c0_i32_0 = arith.constant 0 : i32
    return %arg0, %c0_i32 : i32, i32
  }
  func.func @transform_2(%arg0: i32) -> (i32, i32) {
    %c0_i32 = arith.constant 0 : i32
    %c0_i32_0 = arith.constant 0 : i32
    return %arg0, %c0_i32 : i32, i32
  }
  func.func @transform_3(%arg0: i32) -> (i32, i32) {
    %c0_i32 = arith.constant 0 : i32
    %c0_i32_0 = arith.constant 0 : i32
    return %arg0, %c0_i32 : i32, i32
  }
  func.func @transform_4(%arg0: i32) -> (i32, i32) {
    %c0_i32 = arith.constant 0 : i32
    %c0_i32_0 = arith.constant 0 : i32
    return %arg0, %c0_i32 : i32, i32
  }
  func.func @transform_5(%arg0: i32) -> (i32, i32) {
    %c0_i32 = arith.constant 0 : i32
    %c0_i32_0 = arith.constant 0 : i32
    return %arg0, %c0_i32 : i32, i32
  }
}

</mosaic_0001>

<llo_original>
// kernel: _listwise_ce_step.1
$region0: #{_listwise_ce_step.1}
  #allocation0 [shape = 'u32[]', space=smem, size = 0x4, offset = 0x4, fixed_abs, tag = 'smem constant byte address 0x4 - core index']
  #allocation1 [shape = 'u32[144,128]{1,0:T(1,128)}', space=vmem, size = 0x12000, scoped, tag = 'internal scratch']
  #allocation2 [shape = 'f32[1]{0:T(128)S(6)}', space=smem, size = 0x200, scoped, tag = 'scoped memory for _listwise_ce_step.1']
  %s0 = inlined_call_operand.<no memory space> [shape: f32[1], index: 0, kind: input, shape index: {}]
  %s1 = inlined_call_operand.vmem [shape: f32[8,4], index: 1, kind: input, shape index: {}]
  %s2 = inlined_call_operand.vmem [shape: f32[8,12], index: 2, kind: input, shape index: {}]
  %s3 = inlined_call_operand.vmem [shape: f32[8,4], index: 3, kind: input, shape index: {}]
  %s4 = inlined_call_operand.vmem [shape: f32[8,4], index: 4, kind: output, shape index: {0}]
  %s5 = inlined_call_operand.vmem [shape: f32[1,128], index: 5, kind: output, shape index: {1}]
  %6 = xla_tuple %s4, %s5
  %s7 = sld [smem:[#allocation0]]
  $region34: #{_listwise_ce_step.1} parent=0
    _
  %s9 = ssub.s32 1, %s7
  %s10 = scalar_select 0, %s9, %s7
  %11 = sst [smem:[#allocation2]] %s0
  // Predicated region
  $region2: #{_listwise_ce_step.1} parent=0 // pred_check
    _
  $region3: #{_listwise_ce_step.1} parent=0 // pred_check_branch
    %13 = sbr.rel (0) target = $region5
  $region4: #{_listwise_ce_step.1} parent=0 // pred_region
    _
  $region5: #{_listwise_ce_step.1} parent=0 // pred_fallthru
    _
  // Predicated region
  $region6: #{_listwise_ce_step.1} parent=0 // pred_check
    _
  $region7: #{_listwise_ce_step.1} parent=0 // pred_check_branch
    %15 = sbr.rel (0) target = $region9
  $region8: #{_listwise_ce_step.1} parent=0 // pred_region
    _
  $region9: #{_listwise_ce_step.1} parent=0 // pred_fallthru
    _
  // Predicated region
  $region10: #{_listwise_ce_step.1} parent=0 // pred_check
    _
  $region11: #{_listwise_ce_step.1} parent=0 // pred_check_branch
    %17 = sbr.rel (0) target = $region13
  $region12: #{_listwise_ce_step.1} parent=0 // pred_region
    _
  $region13: #{_listwise_ce_step.1} parent=0 // pred_fallthru
    _
  // Predicated region
  $region14: #{_listwise_ce_step.1} parent=0 // pred_check
    _
  $region15: #{_listwise_ce_step.1} parent=0 // pred_check_branch
    %19 = sbr.rel (0) target = $region17
  $region16: #{_listwise_ce_step.1} parent=0 // pred_region
    _
  $region17: #{_listwise_ce_step.1} parent=0 // pred_fallthru
    _
  %s20 = sld [smem:[#allocation2]]
  %v21 = vld [vmem:[%s1] sm:$0xff]
  %v22 = vld [vmem:[%s2] sm:$0xff]
  %v23 = vld [vmem:[%s3] sm:$0xff]
  %vm24 = vcmask 97280
  %v25 = vsel %vm24, %v22, -inf
  %26 = vmax.xlane.f32.xlu0 %v25
  %v27 = vpop.xlane.xlu0 %26
  %v28 = vsub.f32 %v22, %v27
  %v29 = vmul.f32 %v28, 1.442695
  %v30 = vpow.pop %v29
  %v31 = vstv %s20
  %v32 = vsub.f32 %v27, %v31
  %v33 = vsub.f32 %v32, %v21
  %v34 = vmul.f32 %v33, 1.442695
  %v35 = vpow.pop %v34
  %v36 = vsel %vm24, %v30, 0.0
  %37 = vadd.xlane.f32.xlu0 %v36
  %v38 = vpop.xlane.xlu0 %37
  %v39 = vmul.f32 %v28, %v30
  %v40 = vsel %vm24, %v39, 0.0
  %41 = vadd.xlane.f32.xlu0 %v40
  %v42 = vpop.xlane.xlu0 %41
  %v43 = vmul.f32 %v38, 0.083333336
  %v44 = vmul.f32 %v35, %v43
  %v45 = vmul.f32 %v23, 0.9
  %v46 = vmul.f32 %v44, 0.1
  %v47 = vadd.f32 %v45, %v46
  %vm48 = vcmask 31744
  %49 = vst.msk [vmem:[%s4] sm:$0xff] %vm48, %v47
  %v50 = vsub.f32 %v27, %v21
  %v51 = vmul.f32 %v50, %v38
  %v52 = vadd.f32 %v42, %v51
  %v53 = vmul.f32 %v35, %v52
  %v54 = vadd.f32 %v47, 1e-10
  %v55 = vrcp.pop %v54
  %v56 = vmul.f32 %v53, %v55
  %v57 = vsel %vm48, %v56, 0.0
  %58 = vadd.xlane.f32.xlu0 %v57
  %v59 = vpop.xlane.xlu0 %58
  %v60 = vrot.slane %v59, 4
  %v61 = vadd.f32 %v59, %v60
  %v62 = vrot.slane %v61, 2
  %v63 = vadd.f32 %v61, %v62
  %v64 = vrot.slane %v63, 1
  %v65 = vadd.f32 %v63, %v64
  %s66 = vtos %v65
  %v67 = vstv %s66
  %68 = vst [vmem:[%s5] sm:$0x1] %v67
  // Predicated region
  $region18: #{_listwise_ce_step.1} parent=0 // pred_check
    _
  $region19: #{_listwise_ce_step.1} parent=0 // pred_check_branch
    %70 = sbr.rel (0) target = $region21
  $region20: #{_listwise_ce_step.1} parent=0 // pred_region
    _
  $region21: #{_listwise_ce_step.1} parent=0 // pred_fallthru
    _
  // Predicated region
  $region22: #{_listwise_ce_step.1} parent=0 // pred_check
    _
  $region23: #{_listwise_ce_step.1} parent=0 // pred_check_branch
    %72 = sbr.rel (0) target = $region25
  $region24: #{_listwise_ce_step.1} parent=0 // pred_region
    _
  $region25: #{_listwise_ce_step.1} parent=0 // pred_fallthru
    _
  // Predicated region
  $region26: #{_listwise_ce_step.1} parent=0 // pred_check
    _
  $region27: #{_listwise_ce_step.1} parent=0 // pred_check_branch
    %74 = sbr.rel (0) target = $region29
  $region28: #{_listwise_ce_step.1} parent=0 // pred_region
    _
  $region29: #{_listwise_ce_step.1} parent=0 // pred_fallthru
    _
  // Predicated region
  $region30: #{_listwise_ce_step.1} parent=0 // pred_check
    _
  $region31: #{_listwise_ce_step.1} parent=0 // pred_check_branch
    %76 = sbr.rel (0) target = $region33
  $region32: #{_listwise_ce_step.1} parent=0 // pred_region
    _
  $region33: #{_listwise_ce_step.1} parent=0 // pred_fallthru
    _

</llo_original>
